<compile_context>
chip_gen: v6e
topology: v6e:2x2x1
jax: 0.10.0
libtpu: 0.0.40
codegen_flags: <defaults>
</compile_context>

<pallas_src>
import math

import jax
import jax.numpy as jnp
from jax.experimental import pallas as pl
from jax.experimental.pallas import tpu as pltpu


def _round_up(n, m):
    return ((n + m - 1) // m) * m


def _text_proj_kernel(emb_ref, w_ref, b_ref, bl_ref, sc_ref, tok_ref, bias_ref):
    """Per-batch text preprocessing (grid = (bs,)).

    emb_ref:  (1, L_pad, Dl)  language embeddings (zero-padded rows beyond L)
    w_ref:    (D, Dl)         Linear(Dl, D).weight, pre-scaled by 0.5/exp(log_scale)
    b_ref:    (D, 1)          Linear bias column,   pre-scaled by 1/exp(log_scale)
    bl_ref:   (1, Dl)         bias_lang row
    sc_ref:   (1,) SMEM       [bias0]
    tok_ref:  (1, D, L_pad)   OUT: projected tokens, already transposed (MXU (K,N))
    bias_ref: (1, 1, L_pad)   OUT: per-token bias row (f32)
    """
    emb = emb_ref[0].astype(jnp.float32)                          # (L_pad, Dl)
    # F.normalize(embedding, p=2, dim=-1); zero (padded) rows stay zero.
    sq = jnp.sum(emb * emb, axis=-1, keepdims=True)               # (L_pad, 1)
    emb_n = emb * jax.lax.rsqrt(jnp.maximum(sq, 1e-24))           # rsqrt -> EUP

    # tokens^T = w_scaled @ emb_n^T  (contract Dl)  -> (D, L_pad), produced
    # directly in the layout the hot matmul wants.  Once per batch element.
    tok_t = jax.lax.dot_general(
        w_ref[...], emb_n,
        dimension_numbers=(((1,), (1,)), ((), ())),
        preferred_element_type=jnp.float32) + b_ref[...]          # + (D,1) column
    tok_ref[0] = tok_t.astype(tok_ref.dtype)

    # matmul(embedding, bias_lang) + bias0, lane-dense (1, L_pad) row.
    bias_ref[0] = jax.lax.dot_general(
        bl_ref[...], emb_n,
        dimension_numbers=(((1,), (1,)), ((), ())),
        preferred_element_type=jnp.float32) + sc_ref[0]


def _logits_kernel(x_ref, tok_ref, bias_ref, out_ref):
    """Hot kernel (grid = (bs, A_pad // block_a), both axes parallel).

    x_ref:    (1, block_a, D)    visual-query tile (compute dtype)
    tok_ref:  (1, D, L_pad)      pre-projected tokens^T (compute dtype)
    bias_ref: (1, 1, L_pad)      per-token bias row (f32)
    out_ref:  (1, block_a, L_pad)
    """
    logits = jax.lax.dot_general(                                 # plain NN matmul
        x_ref[0], tok_ref[0],
        dimension_numbers=(((1,), (0,)), ((), ())),
        preferred_element_type=jnp.float32)                       # (block_a, L_pad)
    logits = logits + bias_ref[0]                                 # f32 bias, then clamp
    out_ref[0] = jnp.clip(logits, -50000.0, 50000.0).astype(out_ref.dtype)


def vision_language_align(x, embedding, w, b, bias_lang, log_scale, bias0,
                          *, block_a=None, compute_dtype=None):
    """Pallas forward of VisionLanguageAlign (default flags).

    x:         (bs, A, D)
    embedding: (bs, L, Dl)
    w:         (D, Dl)     nn.Linear(Dl, D).weight
    b:         (D,)        nn.Linear bias
    bias_lang: (Dl,)
    log_scale: scalar
    bias0:     scalar
    returns:   (bs, A, L)  in x.dtype
    """
    bs, A, D = x.shape
    _, L, Dl = embedding.shape
    out_dtype = x.dtype
    compute_dtype = jnp.dtype(x.dtype if compute_dtype is None else compute_dtype)

    # Fold 0.5 (embedding/2) and 1/exp(log_scale) into the projection params.
    inv_scale = jnp.exp(-jnp.asarray(log_scale, jnp.float32))
    w_scaled = jnp.asarray(w, jnp.float32) * (0.5 * inv_scale)        # (D, Dl)
    b_col = (jnp.asarray(b, jnp.float32) * inv_scale).reshape(D, 1)   # (D, 1)
    bl_row = jnp.asarray(bias_lang, jnp.float32).reshape(1, Dl)       # (1, Dl)
    bias0_arr = jnp.asarray(bias0, jnp.float32).reshape(1)            # SMEM scalar

    # Lane-dense token axis: pad L up to a multiple of 128 (sliced off at end).
    L_pad = _round_up(L, 128)
    emb_f = jnp.asarray(embedding, jnp.float32)
    if L_pad != L:
        emb_f = jnp.pad(emb_f, ((0, 0), (0, L_pad - L), (0, 0)))

    # ---- pass 1: per-batch text projection (tiny, grid over batch only) ----
    tok_t, bias = pl.pallas_call(
        _text_proj_kernel,
        out_shape=(jax.ShapeDtypeStruct((bs, D, L_pad), compute_dtype),
                   jax.ShapeDtypeStruct((bs, 1, L_pad), jnp.float32)),
        grid_spec=pltpu.PrefetchScalarGridSpec(
            num_scalar_prefetch=0,
            grid=(bs,),
            in_specs=[
                pl.BlockSpec((1, L_pad, Dl), lambda i: (i, 0, 0)),
                pl.BlockSpec((D, Dl), lambda i: (0, 0)),
                pl.BlockSpec((D, 1), lambda i: (0, 0)),
                pl.BlockSpec((1, Dl), lambda i: (0, 0)),
                pl.BlockSpec(memory_space=pltpu.MemorySpace.SMEM),
            ],
            out_specs=(pl.BlockSpec((1, D, L_pad), lambda i: (i, 0, 0)),
                       pl.BlockSpec((1, 1, L_pad), lambda i: (i, 0, 0))),
        ),
        compiler_params=pltpu.CompilerParams(dimension_semantics=("parallel",)),
    )(emb_f, w_scaled, b_col, bl_row, bias0_arr)

    # ---- pass 2: logits = x @ tokens^T + bias, clamp --------------------
    # Query-axis tile: default 1024 (f32) / 2048 (bf16); rounded to the sublane
    # multiple and chosen to divide the (padded) A so every store is unmasked.
    sub = 8 if compute_dtype.itemsize >= 4 else 16
    if block_a is None:
        block_a = 1024 if compute_dtype.itemsize >= 4 else 2048
    block_a = _round_up(min(block_a, _round_up(A, sub)), sub)
    A_pad = _round_up(A, block_a)

    x_c = x.astype(compute_dtype)
    if A_pad != A:
        x_c = jnp.pad(x_c, ((0, 0), (0, A_pad - A), (0, 0)))

    # tok_t / bias are per-batch constants across the A axis; they're small
    # enough (<=2*D*L_pad*itemsize) that the default double buffer is fine.
    logits = pl.pallas_call(
        _logits_kernel,
        out_shape=jax.ShapeDtypeStruct((bs, A_pad, L_pad), out_dtype),
        grid_spec=pltpu.PrefetchScalarGridSpec(
            num_scalar_prefetch=0,
            grid=(bs, A_pad // block_a),
            in_specs=[
                pl.BlockSpec((1, block_a, D), lambda b_, a_: (b_, a_, 0)),
                pl.BlockSpec((1, D, L_pad), lambda b_, a_: (b_, 0, 0)),
                pl.BlockSpec((1, 1, L_pad), lambda b_, a_: (b_, 0, 0)),
            ],
            out_specs=pl.BlockSpec((1, block_a, L_pad),
                                   lambda b_, a_: (b_, a_, 0)),
        ),
        compiler_params=pltpu.CompilerParams(
            # No cross-iteration state: both axes can be megacore-sharded.
            dimension_semantics=("parallel", "parallel"),
            vmem_limit_bytes=32 * 1024 * 1024),
    )(x_c, tok_t, bias)

    if A_pad != A or L_pad != L:
        logits = logits[:, :A, :L]
    return logits


def _reference(x, embedding, w, b, bias_lang, log_scale, bias0):
    # Pure-JAX f32 reference mirroring the PyTorch forward.
    xf = x.astype(jnp.float32)
    emb = embedding.astype(jnp.float32)
    norm = jnp.sqrt(jnp.sum(emb * emb, axis=-1, keepdims=True))
    emb = emb / jnp.maximum(norm, 1e-12)
    tokens = jnp.einsum("bld,ed->ble", emb / 2.0, w) + b             # (bs, L, D)
    tok_bias = jnp.einsum("bld,d->bl", emb, bias_lang) + bias0       # (bs, L)
    logits = jnp.einsum("bad,bld->bal", xf, tokens) / jnp.exp(log_scale)
    logits = logits + tok_bias[:, None, :]
    return jnp.clip(logits, -50000.0, 50000.0)


if __name__ == "__main__":
    prior_prob = 0.01
    bias0 = jnp.float32(-math.log((1.0 - prior_prob) / prior_prob))
    log_scale = jnp.float32(0.3)   # nonzero so the inv_scale fold is exercised

    # (bs, A, D, L, Dl, block_a, dtype, atol, rtol)
    configs = [
        (2, 16, 32, 8, 64, None, jnp.float32, 1e-4, 1e-4),   # single A tile, L padded to 128
        (2, 40, 32, 8, 64, 16, jnp.float32, 1e-4, 1e-4),     # ragged A (padded), 3 A tiles
        (2, 48, 32, 8, 64, 16, jnp.bfloat16, 8e-2, 5e-2),    # bf16 hot loop / bf16 output
    ]

    for bs, A, D, L, Dl, block_a, dtype, atol, rtol in configs:
        key = jax.random.PRNGKey(0)
        kx, ke, kw, kb, kbl = jax.random.split(key, 5)

        x = jax.random.normal(kx, (bs, A, D), dtype=jnp.float32).astype(dtype)
        embedding = jax.random.normal(ke, (bs, L, Dl), dtype=jnp.float32)
        w = jax.random.normal(kw, (D, Dl), dtype=jnp.float32) * 0.02   # Linear(Dl, D).weight
        b = jax.random.normal(kb, (D,), dtype=jnp.float32) * 0.02
        bias_lang = jax.random.normal(kbl, (Dl,), dtype=jnp.float32) * 0.02

        out = vision_language_align(x, embedding, w, b, bias_lang,
                                    log_scale, bias0, block_a=block_a)
        out = jax.block_until_ready(out)

        assert out.shape == (bs, A, L), out.shape
        assert out.dtype == x.dtype, out.dtype

        ref = _reference(x, embedding, w, b, bias_lang, log_scale, bias0)
        err = float(jnp.max(jnp.abs(out.astype(jnp.float32) - ref)))
        assert jnp.allclose(out.astype(jnp.float32), ref, atol=atol, rtol=rtol), err

    print("KERNEL_OK")
</pallas_src>

<mosaic_0001>
module attributes {stable_mosaic.version = 11 : i64} {
  func.func @_text_proj_kernel(%arg0: i32, %arg1: memref<1x128x64xf32, #tpu.memory_space<vmem>>, %arg2: memref<32x64xf32, #tpu.memory_space<vmem>>, %arg3: memref<32x1xf32, #tpu.memory_space<vmem>>, %arg4: memref<1x64xf32, #tpu.memory_space<vmem>>, %arg5: memref<1xf32, #tpu.memory_space<smem>>, %arg6: memref<1x32x128xf32, #tpu.memory_space<vmem>>, %arg7: memref<1x1x128xf32, #tpu.memory_space<vmem>>) attributes {dimension_semantics = [#tpu.dimension_semantics<parallel>], iteration_bounds = array<i64: 2>, scalar_prefetch = 0 : i64, scratch_operands = 0 : i64, tpu.core_type = #tpu.core_type<tc>, window_params = [{transform_indices = @transform_0, window_bounds = array<i64: 1, 128, 64>}, {pipeline_mode = #tpu.pipeline_mode<synchronous>, transform_indices = @transform_1, window_bounds = array<i64: 32, 64>}, {pipeline_mode = #tpu.pipeline_mode<synchronous>, transform_indices = @transform_2, window_bounds = array<i64: 32, 1>}, {pipeline_mode = #tpu.pipeline_mode<synchronous>, transform_indices = @transform_3, window_bounds = array<i64: 1, 64>}, {transform_indices = @transform_4, window_bounds = array<i64: 1>}, {transform_indices = @transform_5, window_bounds = array<i64: 1, 32, 128>}, {transform_indices = @transform_6, window_bounds = array<i64: 1, 1, 128>}]} {
    %c0 = arith.constant 0 : index
    %c0_0 = arith.constant 0 : index
    %c0_1 = arith.constant 0 : index
    %0 = vector.load %arg1[%c0, %c0_0, %c0_1] : memref<1x128x64xf32, #tpu.memory_space<vmem>>, vector<1x128x64xf32>
    %1 = vector.shape_cast %0 : vector<1x128x64xf32> to vector<128x64xf32>
    %2 = arith.mulf %1, %1 : vector<128x64xf32>
    %cst = arith.constant dense<0.000000e+00> : vector<128xf32>
    %3 = vector.multi_reduction <add>, %2, %cst [1] : vector<128x64xf32> to vector<128xf32>
    %4 = vector.shape_cast %3 : vector<128xf32> to vector<128x1xf32>
    %cst_2 = arith.constant 1.000000e-24 : f32
    %5 = vector.broadcast %cst_2 : f32 to vector<128x1xf32>
    %6 = arith.maximumf %4, %5 : vector<128x1xf32>
    %7 = math.rsqrt %6 : vector<128x1xf32>
    %8 = vector.broadcast %7 : vector<128x1xf32> to vector<128x64xf32>
    %9 = arith.mulf %1, %8 : vector<128x64xf32>
    %c0_3 = arith.constant 0 : index
    %c0_4 = arith.constant 0 : index
    %10 = vector.load %arg2[%c0_3, %c0_4] : memref<32x64xf32, #tpu.memory_space<vmem>>, vector<32x64xf32>
    %cst_5 = arith.constant dense<0.000000e+00> : vector<32x128xf32>
    %11 = tpu.matmul %10, %9, %cst_5 {dimension_numbers = #tpu.dot_dimension_numbers<[1], [1], [0], [0], [0, 0, 1, 0], [], []>} : vector<32x64xf32>, vector<128x64xf32>, vector<32x128xf32> -> vector<32x128xf32>
    %c0_6 = arith.constant 0 : index
    %c0_7 = arith.constant 0 : index
    %12 = vector.load %arg3[%c0_6, %c0_7] : memref<32x1xf32, #tpu.memory_space<vmem>>, vector<32x1xf32>
    %13 = vector.broadcast %12 : vector<32x1xf32> to vector<32x128xf32>
    %14 = arith.addf %11, %13 : vector<32x128xf32>
    %c0_8 = arith.constant 0 : index
    %c0_9 = arith.constant 0 : index
    %c0_10 = arith.constant 0 : index
    %15 = vector.load %arg6[%c0_8, %c0_9, %c0_10] : memref<1x32x128xf32, #tpu.memory_space<vmem>>, vector<1x32x128xf32>
    %16 = vector.shape_cast %15 : vector<1x32x128xf32> to vector<32x128xf32>
    %17 = vector.shape_cast %14 : vector<32x128xf32> to vector<1x32x128xf32>
    tpu.vector_store %arg6[%c0_8, %c0_9, %c0_10], %17 {strides = array<i32>} : memref<1x32x128xf32, #tpu.memory_space<vmem>>, vector<1x32x128xf32>,
    %c0_11 = arith.constant 0 : index
    %c0_12 = arith.constant 0 : index
    %18 = vector.load %arg4[%c0_11, %c0_12] : memref<1x64xf32, #tpu.memory_space<vmem>>, vector<1x64xf32>
    %cst_13 = arith.constant dense<0.000000e+00> : vector<1x128xf32>
    %19 = tpu.matmul %18, %9, %cst_13 {dimension_numbers = #tpu.dot_dimension_numbers<[1], [1], [0], [0], [0, 0, 1, 0], [], []>} : vector<1x64xf32>, vector<128x64xf32>, vector<1x128xf32> -> vector<1x128xf32>
    %c0_14 = arith.constant 0 : index
    %20 = memref.load %arg5[%c0_14] : memref<1xf32, #tpu.memory_space<smem>>
    %21 = vector.broadcast %20 : f32 to vector<1x128xf32>
    %22 = arith.addf %19, %21 : vector<1x128xf32>
    %c0_15 = arith.constant 0 : index
    %c0_16 = arith.constant 0 : index
    %c0_17 = arith.constant 0 : index
    %23 = vector.load %arg7[%c0_15, %c0_16, %c0_17] : memref<1x1x128xf32, #tpu.memory_space<vmem>>, vector<1x1x128xf32>
    %24 = vector.shape_cast %23 : vector<1x1x128xf32> to vector<1x128xf32>
    %25 = vector.shape_cast %22 : vector<1x128xf32> to vector<1x1x128xf32>
    tpu.vector_store %arg7[%c0_15, %c0_16, %c0_17], %25 {strides = array<i32>} : memref<1x1x128xf32, #tpu.memory_space<vmem>>, vector<1x1x128xf32>,
    return
  }
  func.func @transform_0(%arg0: i32) -> (i32, i32, i32) {
    %c0_i32 = arith.constant 0 : i32
    %c0_i32_0 = arith.constant 0 : i32
    %c0_i32_1 = arith.constant 0 : i32
    return %arg0, %c0_i32, %c0_i32_0 : i32, i32, i32
  }
  func.func @transform_1(%arg0: i32) -> (i32, i32) {
    %c0_i32 = arith.constant 0 : i32
    %c0_i32_0 = arith.constant 0 : i32
    %c0_i32_1 = arith.constant 0 : i32
    return %c0_i32, %c0_i32_0 : i32, i32
  }
  func.func @transform_2(%arg0: i32) -> (i32, i32) {
    %c0_i32 = arith.constant 0 : i32
    %c0_i32_0 = arith.constant 0 : i32
    %c0_i32_1 = arith.constant 0 : i32
    return %c0_i32, %c0_i32_0 : i32, i32
  }
  func.func @transform_3(%arg0: i32) -> (i32, i32) {
    %c0_i32 = arith.constant 0 : i32
    %c0_i32_0 = arith.constant 0 : i32
    %c0_i32_1 = arith.constant 0 : i32
    return %c0_i32, %c0_i32_0 : i32, i32
  }
  func.func @transform_4(%arg0: i32) -> i32 {
    %c0_i32 = arith.constant 0 : i32
    %c0_i32_0 = arith.constant 0 : i32
    return %c0_i32 : i32
  }
  func.func @transform_5(%arg0: i32) -> (i32, i32, i32) {
    %c0_i32 = arith.constant 0 : i32
    %c0_i32_0 = arith.constant 0 : i32
    %c0_i32_1 = arith.constant 0 : i32
    return %arg0, %c0_i32, %c0_i32_0 : i32, i32, i32
  }
  func.func @transform_6(%arg0: i32) -> (i32, i32, i32) {
    %c0_i32 = arith.constant 0 : i32
    %c0_i32_0 = arith.constant 0 : i32
    %c0_i32_1 = arith.constant 0 : i32
    return %arg0, %c0_i32, %c0_i32_0 : i32, i32, i32
  }
}

</mosaic_0001>

<llo_original>
// kernel: tpu_custom_call.1
$region0: #{tpu_custom_call.1}
  #allocation0 [shape = 'u32[]', space=smem, size = 0x4, offset = 0x4, fixed_abs, tag = 'smem constant byte address 0x4 - core index']
  #allocation1 [shape = 'u32[144,128]{1,0:T(1,128)}', space=vmem, size = 0x12000, scoped, tag = 'internal scratch']
  #allocation2 [shape = 'f32[1]{0:T(128)S(6)}', space=smem, size = 0x200, scoped, tag = 'scoped memory for tpu_custom_call.1']
  %s0 = inlined_call_operand.vmem [shape: f32[2,128,64], index: 0, kind: input, shape index: {}]
  %s1 = inlined_call_operand.vmem [shape: f32[32,64], index: 1, kind: input, shape index: {}]
  %s2 = inlined_call_operand.vmem [shape: f32[32,1], index: 2, kind: input, shape index: {}]
  %s3 = inlined_call_operand.vmem [shape: f32[1,64], index: 3, kind: input, shape index: {}]
  %s4 = inlined_call_operand.<no memory space> [shape: f32[1], index: 4, kind: input, shape index: {}]
  %s5 = inlined_call_operand.hbm [shape: f32[2,32,128], index: 5, kind: output, shape index: {0}]
  %s6 = inlined_call_operand.hbm [shape: f32[2,1,128], index: 6, kind: output, shape index: {1}]
  %7 = xla_tuple %s5, %s6
  %s8 = sld [smem:[#allocation0]]
  $region61: #{tpu_custom_call.1} parent=0
    _
  %s10 = ssub.s32 1, %s8
  %s11 = scalar_select 0, %s10, %s8
  %12 = sst [smem:[#allocation2]] %s4
  $region1: #{tpu_custom_call.1} parent=0
    #allocation3 [shape = 'u8[32768]{0}', space=vmem, size = 0x8000, scoped, tag = 'output window, operand 0']
    #allocation4 [shape = 's32[2]{0}', space=sflag, size = 0x8, scoped, tag = 'scoped memory for tpu_custom_call.1']
    #allocation5 [shape = 'u8[1024]{0}', space=vmem, size = 0x400, scoped, tag = 'output window, operand 1']
    #allocation6 [shape = 's32[2]{0}', space=sflag, size = 0x8, scoped, tag = 'scoped memory for tpu_custom_call.1']
    %13 = vsyncpa [#allocation4], 0
    %s14 = scalar_lea.sflag [#allocation4], 1
    %15 = vsyncpa %s14, 0
    %16 = vsyncpa [#allocation6], 0
    %s17 = scalar_lea.sflag [#allocation6], 1
    %18 = vsyncpa %s17, 0
    loop: start=0, step=1, limit=4
    $region2: #{tpu_custom_call.1} parent=1 // loop_pre_header
      _
    $region3: #{tpu_custom_call.1} parent=1 // loop_header
      %s20 = sphi 0, %s24
      %p21 = scmp.ge.s32.totalorder %s20, 4
      %s30 = sphi 0, %s32
      %s33 = sphi 0, %s30
      %s34 = sphi 0, %s33
      %s50 = sphi 0, %s34
      %s54 = sphi 0, %s54
      %s56 = sphi 0, %s54
      %s57 = sphi 0, %s56
      %s71 = sphi 0, %s57
      %s75 = sphi 0, %s75
      %s77 = sphi 0, %s75
      %s78 = sphi 0, %s77
      %s92 = sphi 0, %s78
      %s96 = sphi 0, %s96
      %s98 = sphi 0, %s96
      %s99 = sphi 0, %s98
      %s113 = sphi 0, %s99
      %s117 = sphi 0, %s117
      %s119 = sphi 0, %s117
      %s120 = sphi 0, %s119
      %s134 = sphi 0, %s120
      %s140 = sphi 0, %s142
      %s143 = sphi 0, %s140
      %s144 = sphi 0, %s143
      %s160 = sphi 0, %s144
      %s166 = sphi 0, %s168
      %s169 = sphi 0, %s166
      %s170 = sphi 0, %s169
      %s186 = sphi 0, %s170
    $region4: #{tpu_custom_call.1} parent=1 // loop_header_branch
      %23 = sbr.rel (%p21) target = $region8
    $region5: #{tpu_custom_call.1} parent=1 // loop_body
      %s25 = ssub.s32 %s20, 1
      %s26 = ssub.s32 %s20, 2
      %s27 = sadd.s32 %s20, 1
      %s28 = ssub.s32 %s20, %s27
      %p29 = scmp.eq.s32.totalorder %s28, 0
      %s31 = sadd.s32 %s30, 1
      %s32 = scalar_select %p29, %s30, %s31
      %p35 = pneg %p29
      %p36 = scmp.eq.s32.totalorder %s20, 1
      %p37 = por %p35, %p36
      %p38 = scmp.ne.s32.totalorder %s30, %s33
      %p39 = scmp.eq.s32.totalorder %s20, 0
      %p40 = por %p38, %p39
      %p41 = scmp.ne.s32.totalorder %s30, %s33
      %p42 = scmp.eq.s32.totalorder %s25, 1
      %p43 = por %p41, %p42
      %p44 = scmp.ne.s32.totalorder %s33, %s34
      %p45 = scmp.eq.s32.totalorder %s25, 0
      %p46 = por %p44, %p45
      %p47 = scmp.ne.s32.totalorder %s33, %s34
      %p48 = scmp.eq.s32.totalorder %s26, 1
      %p49 = por %p47, %p48
      %p51 = scmp.ne.s32.totalorder %s34, %s50
      %p52 = scmp.eq.s32.totalorder %s26, 0
      %p53 = por %p51, %p52
      %s55 = sadd.s32 %s54, 1
      %p58 = scmp.eq.s32.totalorder %s20, 1
      %p59 = scmp.ne.s32.totalorder %s54, %s56
      %p60 = scmp.eq.s32.totalorder %s20, 0
      %p61 = por %p59, %p60
      %p62 = scmp.ne.s32.totalorder %s54, %s56
      %p63 = scmp.eq.s32.totalorder %s25, 1
      %p64 = por %p62, %p63
      %p65 = scmp.ne.s32.totalorder %s56, %s57
      %p66 = scmp.eq.s32.totalorder %s25, 0
      %p67 = por %p65, %p66
      %p68 = scmp.ne.s32.totalorder %s56, %s57
      %p69 = scmp.eq.s32.totalorder %s26, 1
      %p70 = por %p68, %p69
      %p72 = scmp.ne.s32.totalorder %s57, %s71
      %p73 = scmp.eq.s32.totalorder %s26, 0
      %p74 = por %p72, %p73
      %s76 = sadd.s32 %s75, 1
      %p79 = scmp.eq.s32.totalorder %s20, 1
      %p80 = scmp.ne.s32.totalorder %s75, %s77
      %p81 = scmp.eq.s32.totalorder %s20, 0
      %p82 = por %p80, %p81
      %p83 = scmp.ne.s32.totalorder %s75, %s77
      %p84 = scmp.eq.s32.totalorder %s25, 1
      %p85 = por %p83, %p84
      %p86 = scmp.ne.s32.totalorder %s77, %s78
      %p87 = scmp.eq.s32.totalorder %s25, 0
      %p88 = por %p86, %p87
      %p89 = scmp.ne.s32.totalorder %s77, %s78
      %p90 = scmp.eq.s32.totalorder %s26, 1
      %p91 = por %p89, %p90
      %p93 = scmp.ne.s32.totalorder %s78, %s92
      %p94 = scmp.eq.s32.totalorder %s26, 0
      %p95 = por %p93, %p94
      %s97 = sadd.s32 %s96, 1
      %p100 = scmp.eq.s32.totalorder %s20, 1
      %p101 = scmp.ne.s32.totalorder %s96, %s98
      %p102 = scmp.eq.s32.totalorder %s20, 0
      %p103 = por %p101, %p102
      %p104 = scmp.ne.s32.totalorder %s96, %s98
      %p105 = scmp.eq.s32.totalorder %s25, 1
      %p106 = por %p104, %p105
      %p107 = scmp.ne.s32.totalorder %s98, %s99
      %p108 = scmp.eq.s32.totalorder %s25, 0
      %p109 = por %p107, %p108
      %p110 = scmp.ne.s32.totalorder %s98, %s99
      %p111 = scmp.eq.s32.totalorder %s26, 1
      %p112 = por %p110, %p111
      %p114 = scmp.ne.s32.totalorder %s99, %s113
      %p115 = scmp.eq.s32.totalorder %s26, 0
      %p116 = por %p114, %p115
      %s118 = sadd.s32 %s117, 1
      %p121 = scmp.eq.s32.totalorder %s20, 1
      %p122 = scmp.ne.s32.totalorder %s117, %s119
      %p123 = scmp.eq.s32.totalorder %s20, 0
      %p124 = por %p122, %p123
      %p125 = scmp.ne.s32.totalorder %s117, %s119
      %p126 = scmp.eq.s32.totalorder %s25, 1
      %p127 = por %p125, %p126
      %p128 = scmp.ne.s32.totalorder %s119, %s120
      %p129 = scmp.eq.s32.totalorder %s25, 0
      %p130 = por %p128, %p129
      %p131 = scmp.ne.s32.totalorder %s119, %s120
      %p132 = scmp.eq.s32.totalorder %s26, 1
      %p133 = por %p131, %p132
      %p135 = scmp.ne.s32.totalorder %s120, %s134
      %p136 = scmp.eq.s32.totalorder %s26, 0
      %p137 = por %p135, %p136
      %s138 = ssub.s32 %s20, %s27
      %p139 = scmp.eq.s32.totalorder %s138, 0
      %s141 = sadd.s32 %s140, 1
      %s142 = scalar_select %p139, %s140, %s141
      %p145 = pneg %p139
      %p146 = scmp.eq.s32.totalorder %s20, 1
      %p147 = por %p145, %p146
      %p148 = scmp.ne.s32.totalorder %s140, %s143
      %p149 = scmp.eq.s32.totalorder %s20, 0
      %p150 = por %p148, %p149
      %p151 = scmp.ne.s32.totalorder %s140, %s143
      %p152 = scmp.eq.s32.totalorder %s25, 1
      %p153 = por %p151, %p152
      %p154 = scmp.ne.s32.totalorder %s143, %s144
      %p155 = scmp.eq.s32.totalorder %s25, 0
      %p156 = por %p154, %p155
      %p157 = scmp.ne.s32.totalorder %s143, %s144
      %p158 = scmp.eq.s32.totalorder %s26, 1
      %p159 = por %p157, %p158
      %p161 = scmp.ne.s32.totalorder %s144, %s160
      %p162 = scmp.eq.s32.totalorder %s26, 0
      %p163 = por %p161, %p162
      %s164 = ssub.s32 %s20, %s27
      %p165 = scmp.eq.s32.totalorder %s164, 0
      %s167 = sadd.s32 %s166, 1
      %s168 = scalar_select %p165, %s166, %s167
      %p171 = pneg %p165
      %p172 = scmp.eq.s32.totalorder %s20, 1
      %p173 = por %p171, %p172
      %p174 = scmp.ne.s32.totalorder %s166, %s169
      %p175 = scmp.eq.s32.totalorder %s20, 0
      %p176 = por %p174, %p175
      %p177 = scmp.ne.s32.totalorder %s166, %s169
      %p178 = scmp.eq.s32.totalorder %s25, 1
      %p179 = por %p177, %p178
      %p180 = scmp.ne.s32.totalorder %s169, %s170
      %p181 = scmp.eq.s32.totalorder %s25, 0
      %p182 = por %p180, %p181
      %p183 = scmp.ne.s32.totalorder %s169, %s170
      %p184 = scmp.eq.s32.totalorder %s26, 1
      %p185 = por %p183, %p184
      %p187 = scmp.ne.s32.totalorder %s170, %s186
      %p188 = scmp.eq.s32.totalorder %s26, 0
      %p189 = por %p187, %p188
      %p190 = scmp.le.s32.totalorder 1, %s20
      %p191 = scmp.lt.s32.totalorder %s20, 3
      %p192 = pnand %p190, %p191
      %p193 = pneg %p192
      // Predicated region
      $region9: #{tpu_custom_call.1} parent=5 // pred_check
        _
      $region10: #{tpu_custom_call.1} parent=5 // pred_check_branch
        %195 = sbr.rel (%p192) target = $region12
      $region11: #{tpu_custom_call.1} parent=5 // pred_region
        %s196 = ssub.s32 %s20, 1
        // Predicated region
        $region13: #{tpu_custom_call.1} parent=11 // pred_check
          %p197 = pneg %p67
        $region14: #{tpu_custom_call.1} parent=11 // pred_check_branch
          %199 = sbr.rel (%p197) target = $region16
        $region15: #{tpu_custom_call.1} parent=11 // pred_region
          _
        $region16: #{tpu_custom_call.1} parent=11 // pred_fallthru
          _
        // Predicated region
        $region17: #{tpu_custom_call.1} parent=11 // pred_check
          %p200 = pneg %p88
        $region18: #{tpu_custom_call.1} parent=11 // pred_check_branch
          %202 = sbr.rel (%p200) target = $region20
        $region19: #{tpu_custom_call.1} parent=11 // pred_region
          _
        $region20: #{tpu_custom_call.1} parent=11 // pred_fallthru
          _
        // Predicated region
        $region21: #{tpu_custom_call.1} parent=11 // pred_check
          %p203 = pneg %p109
        $region22: #{tpu_custom_call.1} parent=11 // pred_check_branch
          %205 = sbr.rel (%p203) target = $region24
        $region23: #{tpu_custom_call.1} parent=11 // pred_region
          _
        $region24: #{tpu_custom_call.1} parent=11 // pred_fallthru
          _
        // Predicated region
        $region25: #{tpu_custom_call.1} parent=11 // pred_check
          %p206 = pneg %p130
        $region26: #{tpu_custom_call.1} parent=11 // pred_check_branch
          %208 = sbr.rel (%p206) target = $region28
        $region27: #{tpu_custom_call.1} parent=11 // pred_region
          _
        $region28: #{tpu_custom_call.1} parent=11 // pred_fallthru
          _
      $region12: #{tpu_custom_call.1} parent=5 // pred_fallthru
        _
      %p209 = scmp.lt.s32.totalorder %s20, 2
      // Predicated region
      $region29: #{tpu_custom_call.1} parent=5 // pred_check
        %p210 = pneg %p209
      $region30: #{tpu_custom_call.1} parent=5 // pred_check_branch
        %212 = sbr.rel (%p210) target = $region32
      $region31: #{tpu_custom_call.1} parent=5 // pred_region
        // Predicated region
        $region33: #{tpu_custom_call.1} parent=31 // pred_check
          %p213 = pneg %p40
        $region34: #{tpu_custom_call.1} parent=31 // pred_check_branch
          %215 = sbr.rel (%p213) target = $region36
        $region35: #{tpu_custom_call.1} parent=31 // pred_region
          %p216 = scmp.lt.s32.totalorder %s20, 1
          %s217 = scalar_select %p216, %s20, 1
          %s218 = smul.addr %s217, 16
          %s219 = smul.addr %s218, 8
          %s220 = scalar_lea.vmem %s0, %s219
        $region36: #{tpu_custom_call.1} parent=31 // pred_fallthru
          _
      $region32: #{tpu_custom_call.1} parent=5 // pred_fallthru
        _
      %p221 = scmp.le.s32.totalorder 1, %s20
      %p222 = scmp.lt.s32.totalorder %s20, 3
      %p223 = pnand %p221, %p222
      %p224 = pneg %p223
      // Predicated region
      $region37: #{tpu_custom_call.1} parent=5 // pred_check
        _
      $region38: #{tpu_custom_call.1} parent=5 // pred_check_branch
        %226 = sbr.rel (%p223) target = $region40
      $region39: #{tpu_custom_call.1} parent=5 // pred_region
        %s227 = ssub.s32 %s20, 1
        %p228 = scmp.lt.s32.totalorder %s25, 1
        %s229 = scalar_select %p228, %s25, 1
        %s230 = smul.addr %s229, 16
        %s231 = smul.addr %s230, 8
        %s232 = scalar_lea.vmem %s0, %s231
        %p233 = pneg %p46
        %p234 = pneg %p43
        %p235 = pneg %p67
        %p236 = pneg %p64
        %p237 = pneg %p88
        %p238 = pneg %p85
        %p239 = pneg %p109
        %p240 = pneg %p106
        %p241 = pneg %p130
        %p242 = pneg %p127
        %p243 = pneg %p156
        %p244 = pneg %p153
        %s245 = sand.u32 %s143, 1
        %s246 = scalar_lea.sflag [#allocation4], %s245
        %s247 = sand.u32 %s143, 1
        %s248 = smul.addr %s247, 32
        %s249 = scalar_lea.vmem [#allocation3], %s248
        %p250 = pneg %p182
        %p251 = pneg %p179
        %s252 = sand.u32 %s169, 1
        %s253 = scalar_lea.sflag [#allocation6], %s252
        %s254 = sand.u32 %s169, 1
        %s255 = scalar_lea.vmem [#allocation5], %s254
        %p256 = scmp.lt.s32.totalorder %s25, 1
        %s257 = scalar_select %p256, %s25, 1
        %s258 = smul.addr %s257, 16
        %s259 = smul.addr %s258, 8
        %s260 = scalar_lea.vmem %s0, %s259
        %v261 = vld [vmem:[%s260] sm:$0xff]
        %v262 = vld [vmem:[%s260 + $0x8] sm:$0xff]
        %v263 = vld [vmem:[%s260 + $0x10] sm:$0xff]
        %v264 = vld [vmem:[%s260 + $0x18] sm:$0xff]
        %v265 = vld [vmem:[%s260 + $0x20] sm:$0xff]
        %v266 = vld [vmem:[%s260 + $0x28] sm:$0xff]
        %v267 = vld [vmem:[%s260 + $0x30] sm:$0xff]
        %v268 = vld [vmem:[%s260 + $0x38] sm:$0xff]
        %v269 = vld [vmem:[%s260 + $0x40] sm:$0xff]
        %v270 = vld [vmem:[%s260 + $0x48] sm:$0xff]
        %v271 = vld [vmem:[%s260 + $0x50] sm:$0xff]
        %v272 = vld [vmem:[%s260 + $0x58] sm:$0xff]
        %v273 = vld [vmem:[%s260 + $0x60] sm:$0xff]
        %v274 = vld [vmem:[%s260 + $0x68] sm:$0xff]
        %v275 = vld [vmem:[%s260 + $0x70] sm:$0xff]
        %v276 = vld [vmem:[%s260 + $0x78] sm:$0xff]
        %v277 = vmul.f32 %v261, %v261
        %v278 = vmul.f32 %v262, %v262
        %v279 = vmul.f32 %v263, %v263
        %v280 = vmul.f32 %v264, %v264
        %v281 = vmul.f32 %v265, %v265
        %v282 = vmul.f32 %v266, %v266
        %v283 = vmul.f32 %v267, %v267
        %v284 = vmul.f32 %v268, %v268
        %v285 = vmul.f32 %v269, %v269
        %v286 = vmul.f32 %v270, %v270
        %v287 = vmul.f32 %v271, %v271
        %v288 = vmul.f32 %v272, %v272
        %v289 = vmul.f32 %v273, %v273
        %v290 = vmul.f32 %v274, %v274
        %v291 = vmul.f32 %v275, %v275
        %v292 = vmul.f32 %v276, %v276
        %vm293 = vcmask 523264
        %v294 = vsel %vm293, %v277, 0.0
        %295 = vadd.xlane.f32.xlu0 %v294
        %v296 = vpop.xlane.xlu0 %295
        %v297 = vsel %vm293, %v278, 0.0
        %298 = vadd.xlane.f32.xlu0 %v297
        %v299 = vpop.xlane.xlu0 %298
        %v300 = vsel %vm293, %v279, 0.0
        %301 = vadd.xlane.f32.xlu0 %v300
        %v302 = vpop.xlane.xlu0 %301
        %v303 = vsel %vm293, %v280, 0.0
        %304 = vadd.xlane.f32.xlu0 %v303
        %v305 = vpop.xlane.xlu0 %304
        %v306 = vsel %vm293, %v281, 0.0
        %307 = vadd.xlane.f32.xlu0 %v306
        %v308 = vpop.xlane.xlu0 %307
        %v309 = vsel %vm293, %v282, 0.0
        %310 = vadd.xlane.f32.xlu0 %v309
        %v311 = vpop.xlane.xlu0 %310
        %v312 = vsel %vm293, %v283, 0.0
        %313 = vadd.xlane.f32.xlu0 %v312
        %v314 = vpop.xlane.xlu0 %313
        %v315 = vsel %vm293, %v284, 0.0
        %316 = vadd.xlane.f32.xlu0 %v315
        %v317 = vpop.xlane.xlu0 %316
        %v318 = vsel %vm293, %v285, 0.0
        %319 = vadd.xlane.f32.xlu0 %v318
        %v320 = vpop.xlane.xlu0 %319
        %v321 = vsel %vm293, %v286, 0.0
        %322 = vadd.xlane.f32.xlu0 %v321
        %v323 = vpop.xlane.xlu0 %322
        %v324 = vsel %vm293, %v287, 0.0
        %325 = vadd.xlane.f32.xlu0 %v324
        %v326 = vpop.xlane.xlu0 %325
        %v327 = vsel %vm293, %v288, 0.0
        %328 = vadd.xlane.f32.xlu0 %v327
        %v329 = vpop.xlane.xlu0 %328
        %v330 = vsel %vm293, %v289, 0.0
        %331 = vadd.xlane.f32.xlu0 %v330
        %v332 = vpop.xlane.xlu0 %331
        %v333 = vsel %vm293, %v290, 0.0
        %334 = vadd.xlane.f32.xlu0 %v333
        %v335 = vpop.xlane.xlu0 %334
        %v336 = vsel %vm293, %v291, 0.0
        %337 = vadd.xlane.f32.xlu0 %v336
        %v338 = vpop.xlane.xlu0 %337
        %v339 = vsel %vm293, %v292, 0.0
        %340 = vadd.xlane.f32.xlu0 %v339
        %v341 = vpop.xlane.xlu0 %340
        %v342 = vmax.f32 %v296, 1e-24
        %v343 = vmax.f32 %v299, 1e-24
        %v344 = vmax.f32 %v302, 1e-24
        %v345 = vmax.f32 %v305, 1e-24
        %v346 = vmax.f32 %v308, 1e-24
        %v347 = vmax.f32 %v311, 1e-24
        %v348 = vmax.f32 %v314, 1e-24
        %v349 = vmax.f32 %v317, 1e-24
        %v350 = vmax.f32 %v320, 1e-24
        %v351 = vmax.f32 %v323, 1e-24
        %v352 = vmax.f32 %v326, 1e-24
        %v353 = vmax.f32 %v329, 1e-24
        %v354 = vmax.f32 %v332, 1e-24
        %v355 = vmax.f32 %v335, 1e-24
        %v356 = vmax.f32 %v338, 1e-24
        %v357 = vmax.f32 %v341, 1e-24
        %v358 = vrsqrt.pop %v342
        %v359 = vrsqrt.pop %v343
        %v360 = vrsqrt.pop %v344
        %v361 = vrsqrt.pop %v345
        %v362 = vrsqrt.pop %v346
        %v363 = vrsqrt.pop %v347
        %v364 = vrsqrt.pop %v348
        %v365 = vrsqrt.pop %v349
        %v366 = vrsqrt.pop %v350
        %v367 = vrsqrt.pop %v351
        %v368 = vrsqrt.pop %v352
        %v369 = vrsqrt.pop %v353
        %v370 = vrsqrt.pop %v354
        %v371 = vrsqrt.pop %v355
        %v372 = vrsqrt.pop %v356
        %v373 = vrsqrt.pop %v357
        %v374 = vmul.f32 %v261, %v358
        %v375 = vmul.f32 %v262, %v359
        %v376 = vmul.f32 %v263, %v360
        %v377 = vmul.f32 %v264, %v361
        %v378 = vmul.f32 %v265, %v362
        %v379 = vmul.f32 %v266, %v363
        %v380 = vmul.f32 %v267, %v364
        %v381 = vmul.f32 %v268, %v365
        %v382 = vmul.f32 %v269, %v366
        %v383 = vmul.f32 %v270, %v367
        %v384 = vmul.f32 %v271, %v368
        %v385 = vmul.f32 %v272, %v369
        %v386 = vmul.f32 %v273, %v370
        %v387 = vmul.f32 %v274, %v371
        %v388 = vmul.f32 %v275, %v372
        %v389 = vmul.f32 %v276, %v373
        %v390 = vld [vmem:[%s1] sm:$0xff]
        %v391 = vld [vmem:[%s1 + $0x8] sm:$0xff]
        %v392 = vld [vmem:[%s1 + $0x10] sm:$0xff]
        %v393 = vld [vmem:[%s1 + $0x18] sm:$0xff]
        %v394 = vld [vmem:[%s2] sm:$0xff]
        %v395 = vld [vmem:[%s2 + $0x8] sm:$0xff]
        %v396 = vld [vmem:[%s2 + $0x10] sm:$0xff]
        %v397 = vld [vmem:[%s2 + $0x18] sm:$0xff]
        %399 = vset.pattern.permute.xlu0 0
        %400 = vperm.xlu0 %399, %v394
        %v401 = vpop.permute.xlu0 %400
        %404 = vset.pattern.permute.xlu0 0
        %405 = vperm.xlu0 %404, %v395
        %v406 = vpop.permute.xlu0 %405
        %409 = vset.pattern.permute.xlu0 0
        %410 = vperm.xlu0 %409, %v396
        %v411 = vpop.permute.xlu0 %410
        %414 = vset.pattern.permute.xlu0 0
        %415 = vperm.xlu0 %414, %v397
        %v416 = vpop.permute.xlu0 %415
        %v419 = vsel %vm293, %v390, 0
        %v422 = vsel %vm293, %v391, 0
        %v425 = vsel %vm293, %v392, 0
        %v428 = vsel %vm293, %v393, 0
        %v431 = vsel %vm293, %v374, 0
        %v434 = vsel %vm293, %v375, 0
        %v437 = vsel %vm293, %v376, 0
        %v440 = vsel %vm293, %v377, 0
        %v443 = vsel %vm293, %v378, 0
        %v446 = vsel %vm293, %v379, 0
        %v449 = vsel %vm293, %v380, 0
        %v452 = vsel %vm293, %v381, 0
        %v455 = vsel %vm293, %v382, 0
        %v458 = vsel %vm293, %v383, 0
        %v461 = vsel %vm293, %v384, 0
        %v464 = vsel %vm293, %v385, 0
        %v467 = vsel %vm293, %v386, 0
        %v470 = vsel %vm293, %v387, 0
        %v473 = vsel %vm293, %v388, 0
        %v476 = vsel %vm293, %v389, 0
        %478 = vmatprep.subr.mxu0 0.0
        %479 = vmatpush1.xpose.msra.mxu0 %v476
        %480 = vmatprep.subr.mxu0 0.0
        %481 = vmatpush1.xpose.msra.mxu0 %v473
        %482 = vmatprep.subr.mxu0 0.0
        %483 = vmatpush1.xpose.msra.mxu0 %v470
        %484 = vmatprep.subr.mxu0 0.0
        %485 = vmatpush1.xpose.msra.mxu0 %v467
        %486 = vmatprep.subr.mxu0 0.0
        %487 = vmatpush1.xpose.msra.mxu0 %v464
        %488 = vmatprep.subr.mxu0 0.0
        %489 = vmatpush1.xpose.msra.mxu0 %v461
        %490 = vmatprep.subr.mxu0 0.0
        %491 = vmatpush1.xpose.msra.mxu0 %v458
        %492 = vmatprep.subr.mxu0 0.0
        %493 = vmatpush1.xpose.msra.mxu0 %v455
        %494 = vmatprep.subr.mxu0 0.0
        %495 = vmatpush1.xpose.msra.mxu0 %v452
        %496 = vmatprep.subr.mxu0 0.0
        %497 = vmatpush1.xpose.msra.mxu0 %v449
        %498 = vmatprep.subr.mxu0 0.0
        %499 = vmatpush1.xpose.msra.mxu0 %v446
        %500 = vmatprep.subr.mxu0 0.0
        %501 = vmatpush1.xpose.msra.mxu0 %v443
        %502 = vmatprep.subr.mxu0 0.0
        %503 = vmatpush1.xpose.msra.mxu0 %v440
        %504 = vmatprep.subr.mxu0 0.0
        %505 = vmatpush1.xpose.msra.mxu0 %v437
        %506 = vmatprep.subr.mxu0 0.0
        %507 = vmatpush1.xpose.msra.mxu0 %v434
        %508 = vmatprep.subr.mxu0 0.0
        %509 = vmatpush1.xpose.msra.mxu0 %v431
        %510 = vmatprep.subr.mxu0 0.0
        %511 = vmatpush2.xpose.msra.mxu0 0.0
        %512 = vmatprep.subr.mxu0 0.0
        %513 = vmatpush2.xpose.msra.mxu0 0.0
        %514 = vmatprep.subr.mxu0 0.0
        %515 = vmatpush2.xpose.msra.mxu0 0.0
        %516 = vmatprep.subr.mxu0 0.0
        %517 = vmatpush2.xpose.msra.mxu0 0.0
        %518 = vmatprep.subr.mxu0 0.0
        %519 = vmatpush2.xpose.msra.mxu0 0.0
        %520 = vmatprep.subr.mxu0 0.0
        %521 = vmatpush2.xpose.msra.mxu0 0.0
        %522 = vmatprep.subr.mxu0 0.0
        %523 = vmatpush2.xpose.msra.mxu0 0.0
        %524 = vmatprep.subr.mxu0 0.0
        %525 = vmatpush2.xpose.msra.mxu0 0.0
        %526 = vmatprep.subr.mxu0 0.0
        %527 = vmatpush2.xpose.msra.mxu0 0.0
        %528 = vmatprep.subr.mxu0 0.0
        %529 = vmatpush2.xpose.msra.mxu0 0.0
        %530 = vmatprep.subr.mxu0 0.0
        %531 = vmatpush2.xpose.msra.mxu0 0.0
        %532 = vmatprep.subr.mxu0 0.0
        %533 = vmatpush2.xpose.msra.mxu0 0.0
        %534 = vmatprep.subr.mxu0 0.0
        %535 = vmatpush2.xpose.msra.mxu0 0.0
        %536 = vmatprep.subr.mxu0 0.0
        %537 = vmatpush2.xpose.msra.mxu0 0.0
        %538 = vmatprep.subr.mxu0 0.0
        %539 = vmatpush2.xpose.msra.mxu0 0.0
        %540 = vmatprep.subr.mxu0 0.0
        %541 = vmatpush2.xpose.msra.mxu0 0.0
        %542 = vmatprep.mubr.f32.mxu0 0.0
        %543 = vmatmul.mubr.f32.gmra.mxu0 %v419
        %v544 = vpop.f32.mrf.mxu0
        %v545 = vadd.f32 %v401, %v544
        %v546 = vpop.f32.mrf.mxu0
        %547 = vmatprep.mubr.f32.mxu0 0.0
        %548 = vmatmul.mubr.f32.gmra.mxu0 %v422
        %v549 = vpop.f32.mrf.mxu0
        %v550 = vadd.f32 %v406, %v549
        %v551 = vpop.f32.mrf.mxu0
        %552 = vmatprep.mubr.f32.mxu0 0.0
        %553 = vmatmul.mubr.f32.gmra.mxu0 %v425
        %v554 = vpop.f32.mrf.mxu0
        %v555 = vadd.f32 %v411, %v554
        %v556 = vpop.f32.mrf.mxu0
        %557 = vmatprep.mubr.f32.mxu0 0.0
        %558 = vmatmul.mubr.f32.gmra.mxu0 %v428
        %v559 = vpop.f32.mrf.mxu0
        %v560 = vadd.f32 %v416, %v559
        %v561 = vpop.f32.mrf.mxu0
        %562 = vdwg.mxu0
        %563 = vst [vmem:[%s249] sm:$0xff] %v545
        %564 = vst [vmem:[%s249 + $0x8] sm:$0xff] %v550
        %565 = vst [vmem:[%s249 + $0x10] sm:$0xff] %v555
        %566 = vst [vmem:[%s249 + $0x18] sm:$0xff] %v560
        %v567 = vld [vmem:[%s3] sm:$0x1]
        %s568 = sld [smem:[#allocation2]]
        %v569 = vstv %s568
        %v571 = vsel %vm293, %v567, 0
        %573 = vmatprep.subr.mxu0 0.0
        %574 = vmatpush1.xpose.msra.mxu0 %v476
        %575 = vmatprep.subr.mxu0 0.0
        %576 = vmatpush1.xpose.msra.mxu0 %v473
        %577 = vmatprep.subr.mxu0 0.0
        %578 = vmatpush1.xpose.msra.mxu0 %v470
        %579 = vmatprep.subr.mxu0 0.0
        %580 = vmatpush1.xpose.msra.mxu0 %v467
        %581 = vmatprep.subr.mxu0 0.0
        %582 = vmatpush1.xpose.msra.mxu0 %v464
        %583 = vmatprep.subr.mxu0 0.0
        %584 = vmatpush1.xpose.msra.mxu0 %v461
        %585 = vmatprep.subr.mxu0 0.0
        %586 = vmatpush1.xpose.msra.mxu0 %v458
        %587 = vmatprep.subr.mxu0 0.0
        %588 = vmatpush1.xpose.msra.mxu0 %v455
        %589 = vmatprep.subr.mxu0 0.0
        %590 = vmatpush1.xpose.msra.mxu0 %v452
        %591 = vmatprep.subr.mxu0 0.0
        %592 = vmatpush1.xpose.msra.mxu0 %v449
        %593 = vmatprep.subr.mxu0 0.0
        %594 = vmatpush1.xpose.msra.mxu0 %v446
        %595 = vmatprep.subr.mxu0 0.0
        %596 = vmatpush1.xpose.msra.mxu0 %v443
        %597 = vmatprep.subr.mxu0 0.0
        %598 = vmatpush1.xpose.msra.mxu0 %v440
        %599 = vmatprep.subr.mxu0 0.0
        %600 = vmatpush1.xpose.msra.mxu0 %v437
        %601 = vmatprep.subr.mxu0 0.0
        %602 = vmatpush1.xpose.msra.mxu0 %v434
        %603 = vmatprep.subr.mxu0 0.0
        %604 = vmatpush1.xpose.msra.mxu0 %v431
        %605 = vmatprep.subr.mxu0 0.0
        %606 = vmatpush2.xpose.msra.mxu0 0.0
        %607 = vmatprep.subr.mxu0 0.0
        %608 = vmatpush2.xpose.msra.mxu0 0.0
        %609 = vmatprep.subr.mxu0 0.0
        %610 = vmatpush2.xpose.msra.mxu0 0.0
        %611 = vmatprep.subr.mxu0 0.0
        %612 = vmatpush2.xpose.msra.mxu0 0.0
        %613 = vmatprep.subr.mxu0 0.0
        %614 = vmatpush2.xpose.msra.mxu0 0.0
        %615 = vmatprep.subr.mxu0 0.0
        %616 = vmatpush2.xpose.msra.mxu0 0.0
        %617 = vmatprep.subr.mxu0 0.0
        %618 = vmatpush2.xpose.msra.mxu0 0.0
        %619 = vmatprep.subr.mxu0 0.0
        %620 = vmatpush2.xpose.msra.mxu0 0.0
        %621 = vmatprep.subr.mxu0 0.0
        %622 = vmatpush2.xpose.msra.mxu0 0.0
        %623 = vmatprep.subr.mxu0 0.0
        %624 = vmatpush2.xpose.msra.mxu0 0.0
        %625 = vmatprep.subr.mxu0 0.0
        %626 = vmatpush2.xpose.msra.mxu0 0.0
        %627 = vmatprep.subr.mxu0 0.0
        %628 = vmatpush2.xpose.msra.mxu0 0.0
        %629 = vmatprep.subr.mxu0 0.0
        %630 = vmatpush2.xpose.msra.mxu0 0.0
        %631 = vmatprep.subr.mxu0 0.0
        %632 = vmatpush2.xpose.msra.mxu0 0.0
        %633 = vmatprep.subr.mxu0 0.0
        %634 = vmatpush2.xpose.msra.mxu0 0.0
        %635 = vmatprep.subr.mxu0 0.0
        %636 = vmatpush2.xpose.msra.mxu0 0.0
        %637 = vmatprep.mubr.f32.mxu0 0.0
        %638 = vmatmul.mubr.f32.gmra.mxu0 %v571
        %v639 = vpop.f32.mrf.mxu0
        %v640 = vadd.f32 %v569, %v639
        %v641 = vpop.f32.mrf.mxu0
        %642 = vdwg.mxu0
        %643 = vst [vmem:[%s255] sm:$0x1] %v640
        %s644 = sand.u32 %s143, 1
        %s645 = scalar_lea.sflag [#allocation4], %s644
        %s646 = sand.u32 %s143, 1
        %s647 = smul.addr %s646, 32
        %s648 = scalar_lea.vmem [#allocation3], %s647
        %s649 = sand.u32 %s169, 1
        %s650 = scalar_lea.sflag [#allocation6], %s649
        %s651 = sand.u32 %s169, 1
        %s652 = scalar_lea.vmem [#allocation5], %s651
        // Predicated region
        $region41: #{tpu_custom_call.1} parent=39 // pred_check
          %p653 = pneg %p153
        $region42: #{tpu_custom_call.1} parent=39 // pred_check_branch
          %655 = sbr.rel (%p653) target = $region44
        $region43: #{tpu_custom_call.1} parent=39 // pred_region
          %s657 = ssub.s32 512, 512
          %658 = vsyncadd %s645, %s657
          %s659 = smul.addr %s25, 4
          %s660 = smul.addr %s659, 128
          %s661 = scalar_lea.hbm %s5, %s660
          %s662 = sshll.u32 %s648, 4
          %s663 = int_to_ptr.vmem [resolvable:$true] %s662
          %668 = dma.vmem_to_hbm [thread:$0]  %s663, 512, %s661, %s645, 128, 128, 8
        $region44: #{tpu_custom_call.1} parent=39 // pred_fallthru
          _
        // Predicated region
        $region45: #{tpu_custom_call.1} parent=39 // pred_check
          %p669 = pneg %p179
        $region46: #{tpu_custom_call.1} parent=39 // pred_check_branch
          %671 = sbr.rel (%p669) target = $region48
        $region47: #{tpu_custom_call.1} parent=39 // pred_region
          %s673 = ssub.s32 16, 16
          %674 = vsyncadd %s650, %s673
          %s675 = smul.addr %s25, 16
          %s676 = scalar_lea.hbm %s6, %s675
          %s678 = sshll.u32 %s652, 4
          %s679 = int_to_ptr.vmem [resolvable:$true] %s678
          %681 = dma.vmem_to_hbm [thread:$0]  %s679, 16, %s676, %s650
        $region48: #{tpu_custom_call.1} parent=39 // pred_fallthru
          _
      $region40: #{tpu_custom_call.1} parent=5 // pred_fallthru
        _
      %p682 = scmp.le.s32.totalorder 2, %s20
      // Predicated region
      $region49: #{tpu_custom_call.1} parent=5 // pred_check
        %p683 = pneg %p682
      $region50: #{tpu_custom_call.1} parent=5 // pred_check_branch
        %685 = sbr.rel (%p683) target = $region52
      $region51: #{tpu_custom_call.1} parent=5 // pred_region
        %s686 = ssub.s32 %s20, 2
        // Predicated region
        $region53: #{tpu_custom_call.1} parent=51 // pred_check
          %p687 = pneg %p159
        $region54: #{tpu_custom_call.1} parent=51 // pred_check_branch
          %689 = sbr.rel (%p687) target = $region56
        $region55: #{tpu_custom_call.1} parent=51 // pred_region
          %s690 = sand.u32 %s144, 1
          %s691 = scalar_lea.sflag [#allocation4], %s690
          %s692 = sand.u32 %s144, 1
          %s693 = smul.addr %s692, 32
          %s694 = scalar_lea.vmem [#allocation3], %s693
          %695 = dma.done %s691, 512
        $region56: #{tpu_custom_call.1} parent=51 // pred_fallthru
          _
        // Predicated region
        $region57: #{tpu_custom_call.1} parent=51 // pred_check
          %p696 = pneg %p185
        $region58: #{tpu_custom_call.1} parent=51 // pred_check_branch
          %698 = sbr.rel (%p696) target = $region60
        $region59: #{tpu_custom_call.1} parent=51 // pred_region
          %s699 = sand.u32 %s170, 1
          %s700 = scalar_lea.sflag [#allocation6], %s699
          %s701 = sand.u32 %s170, 1
          %s702 = scalar_lea.vmem [#allocation5], %s701
          %703 = dma.done %s700, 16
        $region60: #{tpu_custom_call.1} parent=51 // pred_fallthru
          _
      $region52: #{tpu_custom_call.1} parent=5 // pred_fallthru
        _
    $region6: #{tpu_custom_call.1} parent=1 // loop_footer
      %s24 = sadd.s32 1, %s20
    $region7: #{tpu_custom_call.1} parent=1 // loop_footer_branch
      %19 = sbr.rel target = $region3
    $region8: #{tpu_custom_call.1} parent=1 // loop_exit
      _
    %704 = vsyncpa [#allocation4], 1
    %s705 = scalar_lea.sflag [#allocation4], 1
    %706 = vsyncpa %s705, 1
    %707 = vsyncpa [#allocation6], 1
    %s708 = scalar_lea.sflag [#allocation6], 1
    %709 = vsyncpa %s708, 1

</llo_original>
